<compile_context>
chip_gen: v7x
topology: tpu7x:2x2x1
jax: 0.10.0
libtpu: 0.0.40
codegen_flags: <defaults>
</compile_context>

<pallas_src>
import jax
import jax.numpy as jnp
from jax.experimental import pallas as pl
from jax.experimental.pallas import tpu as pltpu


def _scale_mul_kernel(x_ref, s_ref, o_ref):
    # x_ref: (1, tc, HW) activation tile in its native dtype,
    # s_ref: (1, tc, 1) per-channel scale column (lane-broadcast),
    # o_ref: (1, tc, HW) in the promoted output dtype.
    o_ref[...] = (x_ref[...] * s_ref[...]).astype(o_ref.dtype)


def _choose_channel_tile(C, row_bytes, tile_bytes, target_steps):
    """Pick the channel-tile size (second-minor block dim).

    Multiple of 8 (sublane rule) unless it equals the full extent C.  Sized
    from a ~1 MiB VMEM budget, but also capped so the grid has >= target_steps
    iterations along C (DMA/writeback overlap; megacore sharding on v7x).
    """
    if C <= 8:
        return C  # full extent allowed even if not a multiple of 8
    # VMEM byte budget per tile.
    fit = max(8, (max(1, tile_bytes // max(1, row_bytes)) // 8) * 8)
    # Aim for >= target_steps grid steps along C.
    want = max(8, ((pl.cdiv(C, target_steps) + 7) // 8) * 8)
    tc = min(fit, want)
    # Never larger than (8-padded) C.
    return min(tc, ((C + 7) // 8) * 8)


def broadcast_channel_mul(x, scale, *, tile_bytes=1 * 1024 * 1024,
                          target_steps=8, donate_x=False):
    """x: [N, C, H, W], scale: [N, C, 1, 1] -> [N, C, H, W]  (x * scale)."""
    N, C, H, W = x.shape
    assert scale.shape == (N, C, 1, 1)
    HW = H * W
    out_dtype = jnp.result_type(x.dtype, scale.dtype)

    # Native contiguous views — no HBM transposes, no wrapper-side upcasts.
    x3 = x.reshape(N, C, HW)
    s3 = scale.reshape(N, C, 1)

    row_bytes = HW * jnp.dtype(x.dtype).itemsize
    tc = _choose_channel_tile(C, row_bytes, tile_bytes, target_steps)
    nct = pl.cdiv(C, tc)

    extra = {}
    if donate_x and out_dtype == x.dtype:
        extra["input_output_aliases"] = {0: 0}

    out3 = pl.pallas_call(
        _scale_mul_kernel,
        out_shape=jax.ShapeDtypeStruct((N, C, HW), out_dtype),
        grid_spec=pltpu.PrefetchScalarGridSpec(
            num_scalar_prefetch=0,
            grid=(N, nct),
            in_specs=[
                pl.BlockSpec((1, tc, HW), lambda n, c: (n, c, 0)),
                pl.BlockSpec((1, tc, 1), lambda n, c: (n, c, 0)),
            ],
            out_specs=pl.BlockSpec((1, tc, HW), lambda n, c: (n, c, 0)),
        ),
        compiler_params=pltpu.CompilerParams(
            dimension_semantics=("parallel", "parallel"),
        ),
        **extra,
    )(x3, s3)

    return out3.reshape(N, C, H, W)


if __name__ == "__main__":
    key = jax.random.PRNGKey(0)
    k1, k2, k3, k4, k5, k6 = jax.random.split(key, 6)

    # 1) The exact module shape (1, 3840, 7, 7) * (1, 3840, 1, 1), float32.
    N, C, H, W = 1, 3840, 7, 7
    x789 = jax.random.normal(k1, (N, C, H, W), dtype=jnp.float32)
    x794 = jax.random.normal(k2, (N, C, 1, 1), dtype=jnp.float32)
    out = broadcast_channel_mul(x789, x794)
    jax.block_until_ready(out)
    ref = x789 * x794
    assert out.shape == (N, C, H, W)
    assert out.dtype == ref.dtype
    assert jnp.allclose(out, ref, atol=1e-6, rtol=1e-6)

    # 2) Mixed dtype (bf16 activation, f32 scale): promotion happens in-kernel,
    #    HBM read stays at the bf16 footprint.
    N2, C2, H2, W2 = 2, 384, 7, 7
    xb = jax.random.normal(k3, (N2, C2, H2, W2), dtype=jnp.bfloat16)
    sb = jax.random.normal(k4, (N2, C2, 1, 1), dtype=jnp.float32)
    outb = broadcast_channel_mul(xb, sb)
    jax.block_until_ready(outb)
    refb = xb * sb
    assert outb.shape == (N2, C2, H2, W2)
    assert outb.dtype == refb.dtype
    assert jnp.allclose(outb, refb, atol=1e-5, rtol=1e-5)

    # 3) Padded partial channel tiles + non-128-multiple channel count +
    #    lane-dense spatial (exercises the tiled path with a tiny budget).
    N3, C3, H3, W3 = 2, 48, 16, 16
    xc = jax.random.normal(k5, (N3, C3, H3, W3), dtype=jnp.float32)
    sc = jax.random.normal(k6, (N3, C3, 1, 1), dtype=jnp.float32)
    outc = broadcast_channel_mul(xc, sc, tile_bytes=8 * 1024, target_steps=4)
    jax.block_until_ready(outc)
    refc = xc * sc
    assert outc.shape == (N3, C3, H3, W3)
    assert jnp.allclose(outc, refc, atol=1e-6, rtol=1e-6)

    print("KERNEL_OK")
</pallas_src>

<mosaic_0001>
module attributes {stable_mosaic.version = 11 : i64} {
  func.func @_scale_mul_kernel(%arg0: i32, %arg1: i32, %arg2: memref<1x480x49xf32, #tpu.memory_space<vmem>>, %arg3: memref<1x480x1xf32, #tpu.memory_space<vmem>>, %arg4: memref<1x480x49xf32, #tpu.memory_space<vmem>>) attributes {dimension_semantics = [#tpu.dimension_semantics<parallel>, #tpu.dimension_semantics<parallel>], iteration_bounds = array<i64: 1, 8>, scalar_prefetch = 0 : i64, scratch_operands = 0 : i64, tpu.core_type = #tpu.core_type<tc>, window_params = [{transform_indices = @transform_0, window_bounds = array<i64: 1, 480, 49>}, {transform_indices = @transform_1, window_bounds = array<i64: 1, 480, 1>}, {transform_indices = @transform_2, window_bounds = array<i64: 1, 480, 49>}]} {
    %c0 = arith.constant 0 : index
    %c0_0 = arith.constant 0 : index
    %c0_1 = arith.constant 0 : index
    %0 = vector.load %arg2[%c0, %c0_0, %c0_1] : memref<1x480x49xf32, #tpu.memory_space<vmem>>, vector<1x480x49xf32>
    %c0_2 = arith.constant 0 : index
    %c0_3 = arith.constant 0 : index
    %c0_4 = arith.constant 0 : index
    %1 = vector.load %arg3[%c0_2, %c0_3, %c0_4] : memref<1x480x1xf32, #tpu.memory_space<vmem>>, vector<1x480x1xf32>
    %2 = vector.broadcast %1 : vector<1x480x1xf32> to vector<1x480x49xf32>
    %3 = arith.mulf %0, %2 : vector<1x480x49xf32>
    %c0_5 = arith.constant 0 : index
    %c0_6 = arith.constant 0 : index
    %c0_7 = arith.constant 0 : index
    %4 = vector.load %arg4[%c0_5, %c0_6, %c0_7] : memref<1x480x49xf32, #tpu.memory_space<vmem>>, vector<1x480x49xf32>
    tpu.vector_store %arg4[%c0_5, %c0_6, %c0_7], %3 {strides = array<i32>} : memref<1x480x49xf32, #tpu.memory_space<vmem>>, vector<1x480x49xf32>,
    return
  }
  func.func @transform_0(%arg0: i32, %arg1: i32) -> (i32, i32, i32) {
    %c0_i32 = arith.constant 0 : i32
    %c0_i32_0 = arith.constant 0 : i32
    return %arg0, %arg1, %c0_i32 : i32, i32, i32
  }
  func.func @transform_1(%arg0: i32, %arg1: i32) -> (i32, i32, i32) {
    %c0_i32 = arith.constant 0 : i32
    %c0_i32_0 = arith.constant 0 : i32
    return %arg0, %arg1, %c0_i32 : i32, i32, i32
  }
  func.func @transform_2(%arg0: i32, %arg1: i32) -> (i32, i32, i32) {
    %c0_i32 = arith.constant 0 : i32
    %c0_i32_0 = arith.constant 0 : i32
    return %arg0, %arg1, %c0_i32 : i32, i32, i32
  }
}

</mosaic_0001>

<llo_original>
// kernel: tpu_custom_call.1
$region0: #{tpu_custom_call.1}
  #allocation0 [shape = 'u32[]', space=smem, size = 0x4, offset = 0x4, fixed_abs, tag = 'smem constant byte address 0x4 - core index']
  #allocation1 [shape = 'u32[144,128]{1,0:T(1,128)}', space=vmem, size = 0x12000, scoped, tag = 'internal scratch']
  %s0 = inlined_call_operand.vmem [shape: f32[1,3840,49], index: 0, kind: input, shape index: {}]
  %s1 = inlined_call_operand.vmem [shape: f32[1,3840,1], index: 1, kind: input, shape index: {}]
  %s2 = inlined_call_operand.vmem [shape: f32[1,3840,49], index: 2, kind: output, shape index: {}]
  %s3 = sld [smem:[#allocation0]]
  $region41: #{tpu_custom_call.1} parent=0
    _
  %s5 = ssub.s32 1, %s3
  %s6 = scalar_select 0, %s5, %s3
  loop: start=0, step=1, limit=10
  $region2: #{tpu_custom_call.1} parent=0 // loop_pre_header
    _
  $region3: #{tpu_custom_call.1} parent=0 // loop_header
    %s8 = sphi 0, %s12
    %p9 = scmp.ge.s32.totalorder %s8, 10
    %s15 = sphi 0, %s27
    %s16 = sphi 0, %s23
    %s17 = sphi 0, %s15
    %s18 = sphi 0, %s16
    %s19 = sphi 0, %s17
    %s20 = sphi 0, %s18
    %s32 = sphi 0, %s34
    %s35 = sphi 0, %s32
    %s36 = sphi 0, %s35
    %s52 = sphi 0, %s36
    %s60 = sphi 0, %s62
    %s63 = sphi 0, %s60
    %s64 = sphi 0, %s63
    %s80 = sphi 0, %s64
    %s88 = sphi 0, %s90
    %s91 = sphi 0, %s88
    %s92 = sphi 0, %s91
    %s108 = sphi 0, %s92
  $region4: #{tpu_custom_call.1} parent=0 // loop_header_branch
    %11 = sbr.rel (%p9) target = $region8
  $region5: #{tpu_custom_call.1} parent=0 // loop_body
    %s13 = ssub.s32 %s8, 1
    %s14 = ssub.s32 %s8, 2
    %s21 = sadd.s32 1, %s16
    %p22 = scmp.ge.s32.totalorder %s21, 8
    %s23 = scalar_select %p22, 0, %s21
    %s24 = sadd.s32 1, %s15
    %s25 = scalar_select %p22, %s24, %s15
    %p26 = scmp.ge.s32.totalorder %s25, 1
    %s27 = scalar_select %p26, 0, %s25
    %s28 = ssub.s32 %s15, %s27
    %s29 = ssub.s32 %s16, %s23
    %s30 = sor.u32 %s28, %s29
    %p31 = scmp.eq.s32.totalorder %s30, 0
    %s33 = sadd.s32 %s32, 1
    %s34 = scalar_select %p31, %s32, %s33
    %p37 = pneg %p31
    %p38 = scmp.eq.s32.totalorder %s8, 7
    %p39 = por %p37, %p38
    %p40 = scmp.ne.s32.totalorder %s32, %s35
    %p41 = scmp.eq.s32.totalorder %s8, 0
    %p42 = por %p40, %p41
    %p43 = scmp.ne.s32.totalorder %s32, %s35
    %p44 = scmp.eq.s32.totalorder %s13, 7
    %p45 = por %p43, %p44
    %p46 = scmp.ne.s32.totalorder %s35, %s36
    %p47 = scmp.eq.s32.totalorder %s13, 0
    %p48 = por %p46, %p47
    %p49 = scmp.ne.s32.totalorder %s35, %s36
    %p50 = scmp.eq.s32.totalorder %s14, 7
    %p51 = por %p49, %p50
    %p53 = scmp.ne.s32.totalorder %s36, %s52
    %p54 = scmp.eq.s32.totalorder %s14, 0
    %p55 = por %p53, %p54
    %s56 = ssub.s32 %s15, %s27
    %s57 = ssub.s32 %s16, %s23
    %s58 = sor.u32 %s56, %s57
    %p59 = scmp.eq.s32.totalorder %s58, 0
    %s61 = sadd.s32 %s60, 1
    %s62 = scalar_select %p59, %s60, %s61
    %p65 = pneg %p59
    %p66 = scmp.eq.s32.totalorder %s8, 7
    %p67 = por %p65, %p66
    %p68 = scmp.ne.s32.totalorder %s60, %s63
    %p69 = scmp.eq.s32.totalorder %s8, 0
    %p70 = por %p68, %p69
    %p71 = scmp.ne.s32.totalorder %s60, %s63
    %p72 = scmp.eq.s32.totalorder %s13, 7
    %p73 = por %p71, %p72
    %p74 = scmp.ne.s32.totalorder %s63, %s64
    %p75 = scmp.eq.s32.totalorder %s13, 0
    %p76 = por %p74, %p75
    %p77 = scmp.ne.s32.totalorder %s63, %s64
    %p78 = scmp.eq.s32.totalorder %s14, 7
    %p79 = por %p77, %p78
    %p81 = scmp.ne.s32.totalorder %s64, %s80
    %p82 = scmp.eq.s32.totalorder %s14, 0
    %p83 = por %p81, %p82
    %s84 = ssub.s32 %s15, %s27
    %s85 = ssub.s32 %s16, %s23
    %s86 = sor.u32 %s84, %s85
    %p87 = scmp.eq.s32.totalorder %s86, 0
    %s89 = sadd.s32 %s88, 1
    %s90 = scalar_select %p87, %s88, %s89
    %p93 = pneg %p87
    %p94 = scmp.eq.s32.totalorder %s8, 7
    %p95 = por %p93, %p94
    %p96 = scmp.ne.s32.totalorder %s88, %s91
    %p97 = scmp.eq.s32.totalorder %s8, 0
    %p98 = por %p96, %p97
    %p99 = scmp.ne.s32.totalorder %s88, %s91
    %p100 = scmp.eq.s32.totalorder %s13, 7
    %p101 = por %p99, %p100
    %p102 = scmp.ne.s32.totalorder %s91, %s92
    %p103 = scmp.eq.s32.totalorder %s13, 0
    %p104 = por %p102, %p103
    %p105 = scmp.ne.s32.totalorder %s91, %s92
    %p106 = scmp.eq.s32.totalorder %s14, 7
    %p107 = por %p105, %p106
    %p109 = scmp.ne.s32.totalorder %s92, %s108
    %p110 = scmp.eq.s32.totalorder %s14, 0
    %p111 = por %p109, %p110
    %p112 = scmp.le.s32.totalorder 1, %s8
    %p113 = scmp.lt.s32.totalorder %s8, 9
    %p114 = pnand %p112, %p113
    %p115 = pneg %p114
    // Predicated region
    $region9: #{tpu_custom_call.1} parent=5 // pred_check
      _
    $region10: #{tpu_custom_call.1} parent=5 // pred_check_branch
      %117 = sbr.rel (%p114) target = $region12
    $region11: #{tpu_custom_call.1} parent=5 // pred_region
      %s118 = ssub.s32 %s8, 1
    $region12: #{tpu_custom_call.1} parent=5 // pred_fallthru
      _
    %p119 = scmp.lt.s32.totalorder %s8, 8
    // Predicated region
    $region13: #{tpu_custom_call.1} parent=5 // pred_check
      %p120 = pneg %p119
    $region14: #{tpu_custom_call.1} parent=5 // pred_check_branch
      %122 = sbr.rel (%p120) target = $region16
    $region15: #{tpu_custom_call.1} parent=5 // pred_region
      // Predicated region
      $region17: #{tpu_custom_call.1} parent=15 // pred_check
        %p123 = pneg %p42
      $region18: #{tpu_custom_call.1} parent=15 // pred_check_branch
        %125 = sbr.rel (%p123) target = $region20
      $region19: #{tpu_custom_call.1} parent=15 // pred_region
        %s126 = smul.u32 60, %s16
        %p127 = scmp.lt.s32.totalorder %s15, 0
        %s128 = scalar_select %p127, %s15, 0
        %p129 = scmp.lt.s32.totalorder %s126, 479
        %s130 = scalar_select %p129, %s126, 479
        %s131 = smul.addr %s128, 480
        %s132 = sadd.s32 %s130, %s131
        %s133 = smul.addr %s132, 8
        %s134 = scalar_lea.vmem %s0, %s133
        %s135 = smul.u32 60, %s16
      $region20: #{tpu_custom_call.1} parent=15 // pred_fallthru
        _
      // Predicated region
      $region21: #{tpu_custom_call.1} parent=15 // pred_check
        %p136 = pneg %p70
      $region22: #{tpu_custom_call.1} parent=15 // pred_check_branch
        %138 = sbr.rel (%p136) target = $region24
      $region23: #{tpu_custom_call.1} parent=15 // pred_region
        %s139 = smul.u32 60, %s16
        %p140 = scmp.lt.s32.totalorder %s15, 0
        %s141 = scalar_select %p140, %s15, 0
        %p142 = scmp.lt.s32.totalorder %s139, 479
        %s143 = scalar_select %p142, %s139, 479
        %s144 = smul.addr %s141, 480
        %s145 = sadd.s32 %s143, %s144
        %s146 = smul.addr %s145, 8
        %s147 = scalar_lea.vmem %s1, %s146
        %s148 = smul.u32 60, %s16
      $region24: #{tpu_custom_call.1} parent=15 // pred_fallthru
        _
    $region16: #{tpu_custom_call.1} parent=5 // pred_fallthru
      _
    %p149 = scmp.le.s32.totalorder 1, %s8
    %p150 = scmp.lt.s32.totalorder %s8, 9
    %p151 = pnand %p149, %p150
    %p152 = pneg %p151
    // Predicated region
    $region25: #{tpu_custom_call.1} parent=5 // pred_check
      _
    $region26: #{tpu_custom_call.1} parent=5 // pred_check_branch
      %154 = sbr.rel (%p151) target = $region28
    $region27: #{tpu_custom_call.1} parent=5 // pred_region
      %s155 = ssub.s32 %s8, 1
      %s156 = smul.u32 60, %s18
      %p157 = scmp.lt.s32.totalorder %s17, 0
      %s158 = scalar_select %p157, %s17, 0
      %p159 = scmp.lt.s32.totalorder %s156, 479
      %s160 = scalar_select %p159, %s156, 479
      %s161 = smul.addr %s158, 480
      %s162 = sadd.s32 %s160, %s161
      %s163 = smul.addr %s162, 8
      %s164 = scalar_lea.vmem %s0, %s163
      %p165 = pneg %p48
      %p166 = pneg %p45
      %s167 = smul.u32 60, %s18
      %p168 = scmp.lt.s32.totalorder %s17, 0
      %s169 = scalar_select %p168, %s17, 0
      %p170 = scmp.lt.s32.totalorder %s167, 479
      %s171 = scalar_select %p170, %s167, 479
      %s172 = smul.addr %s169, 480
      %s173 = sadd.s32 %s171, %s172
      %s174 = smul.addr %s173, 8
      %s175 = scalar_lea.vmem %s1, %s174
      %p176 = pneg %p76
      %p177 = pneg %p73
      %p178 = pneg %p104
      %p179 = pneg %p101
      %s180 = smul.u32 60, %s18
      %p181 = scmp.lt.s32.totalorder %s17, 0
      %s182 = scalar_select %p181, %s17, 0
      %p183 = scmp.lt.s32.totalorder %s180, 479
      %s184 = scalar_select %p183, %s180, 479
      %s185 = smul.addr %s182, 480
      %s186 = sadd.s32 %s184, %s185
      %s187 = smul.addr %s186, 8
      %s188 = scalar_lea.vmem %s2, %s187
      %s189 = smul.u32 60, %s18
      %p190 = scmp.lt.s32.totalorder %s17, 0
      %s191 = scalar_select %p190, %s17, 0
      %p192 = scmp.lt.s32.totalorder %s189, 479
      %s193 = scalar_select %p192, %s189, 479
      %s194 = smul.addr %s191, 480
      %s195 = sadd.s32 %s193, %s194
      %s196 = smul.addr %s195, 8
      %s197 = scalar_lea.vmem %s0, %s196
      %s198 = smul.u32 60, %s18
      %s199 = smul.u32 60, %s18
      %p200 = scmp.lt.s32.totalorder %s17, 0
      %s201 = scalar_select %p200, %s17, 0
      %p202 = scmp.lt.s32.totalorder %s199, 479
      %s203 = scalar_select %p202, %s199, 479
      %s204 = smul.addr %s201, 480
      %s205 = sadd.s32 %s203, %s204
      %s206 = smul.addr %s205, 8
      %s207 = scalar_lea.vmem %s1, %s206
      %s208 = smul.u32 60, %s18
      %s209 = smul.u32 60, %s18
      %p210 = scmp.lt.s32.totalorder %s17, 0
      %s211 = scalar_select %p210, %s17, 0
      %p212 = scmp.lt.s32.totalorder %s209, 479
      %s213 = scalar_select %p212, %s209, 479
      %s214 = smul.addr %s211, 480
      %s215 = sadd.s32 %s213, %s214
      %s216 = smul.addr %s215, 8
      %s217 = scalar_lea.vmem %s2, %s216
      %s218 = smul.u32 60, %s18
      %v219 = vld [vmem:[%s197] sm:$0xff]
      %v220 = vld [vmem:[%s197 + $0x8] sm:$0xff]
      %v221 = vld [vmem:[%s197 + $0x10] sm:$0xff]
      %v222 = vld [vmem:[%s197 + $0x18] sm:$0xff]
      %v223 = vld [vmem:[%s197 + $0x20] sm:$0xff]
      %v224 = vld [vmem:[%s197 + $0x28] sm:$0xff]
      %v225 = vld [vmem:[%s197 + $0x30] sm:$0xff]
      %v226 = vld [vmem:[%s197 + $0x38] sm:$0xff]
      %v227 = vld [vmem:[%s197 + $0x40] sm:$0xff]
      %v228 = vld [vmem:[%s197 + $0x48] sm:$0xff]
      %v229 = vld [vmem:[%s197 + $0x50] sm:$0xff]
      %v230 = vld [vmem:[%s197 + $0x58] sm:$0xff]
      %v231 = vld [vmem:[%s197 + $0x60] sm:$0xff]
      %v232 = vld [vmem:[%s197 + $0x68] sm:$0xff]
      %v233 = vld [vmem:[%s197 + $0x70] sm:$0xff]
      %v234 = vld [vmem:[%s197 + $0x78] sm:$0xff]
      %v235 = vld [vmem:[%s197 + $0x80] sm:$0xff]
      %v236 = vld [vmem:[%s197 + $0x88] sm:$0xff]
      %v237 = vld [vmem:[%s197 + $0x90] sm:$0xff]
      %v238 = vld [vmem:[%s197 + $0x98] sm:$0xff]
      %v239 = vld [vmem:[%s197 + $0xa0] sm:$0xff]
      %v240 = vld [vmem:[%s197 + $0xa8] sm:$0xff]
      %v241 = vld [vmem:[%s197 + $0xb0] sm:$0xff]
      %v242 = vld [vmem:[%s197 + $0xb8] sm:$0xff]
      %v243 = vld [vmem:[%s197 + $0xc0] sm:$0xff]
      %v244 = vld [vmem:[%s197 + $0xc8] sm:$0xff]
      %v245 = vld [vmem:[%s197 + $0xd0] sm:$0xff]
      %v246 = vld [vmem:[%s197 + $0xd8] sm:$0xff]
      %v247 = vld [vmem:[%s197 + $0xe0] sm:$0xff]
      %v248 = vld [vmem:[%s197 + $0xe8] sm:$0xff]
      %v249 = vld [vmem:[%s197 + $0xf0] sm:$0xff]
      %v250 = vld [vmem:[%s197 + $0xf8] sm:$0xff]
      %v251 = vld [vmem:[%s197 + $0x100] sm:$0xff]
      %v252 = vld [vmem:[%s197 + $0x108] sm:$0xff]
      %v253 = vld [vmem:[%s197 + $0x110] sm:$0xff]
      %v254 = vld [vmem:[%s197 + $0x118] sm:$0xff]
      %v255 = vld [vmem:[%s197 + $0x120] sm:$0xff]
      %v256 = vld [vmem:[%s197 + $0x128] sm:$0xff]
      %v257 = vld [vmem:[%s197 + $0x130] sm:$0xff]
      %v258 = vld [vmem:[%s197 + $0x138] sm:$0xff]
      %v259 = vld [vmem:[%s197 + $0x140] sm:$0xff]
      %v260 = vld [vmem:[%s197 + $0x148] sm:$0xff]
      %v261 = vld [vmem:[%s197 + $0x150] sm:$0xff]
      %v262 = vld [vmem:[%s197 + $0x158] sm:$0xff]
      %v263 = vld [vmem:[%s197 + $0x160] sm:$0xff]
      %v264 = vld [vmem:[%s197 + $0x168] sm:$0xff]
      %v265 = vld [vmem:[%s197 + $0x170] sm:$0xff]
      %v266 = vld [vmem:[%s197 + $0x178] sm:$0xff]
      %v267 = vld [vmem:[%s197 + $0x180] sm:$0xff]
      %v268 = vld [vmem:[%s197 + $0x188] sm:$0xff]
      %v269 = vld [vmem:[%s197 + $0x190] sm:$0xff]
      %v270 = vld [vmem:[%s197 + $0x198] sm:$0xff]
      %v271 = vld [vmem:[%s197 + $0x1a0] sm:$0xff]
      %v272 = vld [vmem:[%s197 + $0x1a8] sm:$0xff]
      %v273 = vld [vmem:[%s197 + $0x1b0] sm:$0xff]
      %v274 = vld [vmem:[%s197 + $0x1b8] sm:$0xff]
      %v275 = vld [vmem:[%s197 + $0x1c0] sm:$0xff]
      %v276 = vld [vmem:[%s197 + $0x1c8] sm:$0xff]
      %v277 = vld [vmem:[%s197 + $0x1d0] sm:$0xff]
      %v278 = vld [vmem:[%s197 + $0x1d8] sm:$0xff]
      %v279 = vld [vmem:[%s207] sm:$0xff]
      %v280 = vld [vmem:[%s207 + $0x8] sm:$0xff]
      %v281 = vld [vmem:[%s207 + $0x10] sm:$0xff]
      %v282 = vld [vmem:[%s207 + $0x18] sm:$0xff]
      %v283 = vld [vmem:[%s207 + $0x20] sm:$0xff]
      %v284 = vld [vmem:[%s207 + $0x28] sm:$0xff]
      %v285 = vld [vmem:[%s207 + $0x30] sm:$0xff]
      %v286 = vld [vmem:[%s207 + $0x38] sm:$0xff]
      %v287 = vld [vmem:[%s207 + $0x40] sm:$0xff]
      %v288 = vld [vmem:[%s207 + $0x48] sm:$0xff]
      %v289 = vld [vmem:[%s207 + $0x50] sm:$0xff]
      %v290 = vld [vmem:[%s207 + $0x58] sm:$0xff]
      %v291 = vld [vmem:[%s207 + $0x60] sm:$0xff]
      %v292 = vld [vmem:[%s207 + $0x68] sm:$0xff]
      %v293 = vld [vmem:[%s207 + $0x70] sm:$0xff]
      %v294 = vld [vmem:[%s207 + $0x78] sm:$0xff]
      %v295 = vld [vmem:[%s207 + $0x80] sm:$0xff]
      %v296 = vld [vmem:[%s207 + $0x88] sm:$0xff]
      %v297 = vld [vmem:[%s207 + $0x90] sm:$0xff]
      %v298 = vld [vmem:[%s207 + $0x98] sm:$0xff]
      %v299 = vld [vmem:[%s207 + $0xa0] sm:$0xff]
      %v300 = vld [vmem:[%s207 + $0xa8] sm:$0xff]
      %v301 = vld [vmem:[%s207 + $0xb0] sm:$0xff]
      %v302 = vld [vmem:[%s207 + $0xb8] sm:$0xff]
      %v303 = vld [vmem:[%s207 + $0xc0] sm:$0xff]
      %v304 = vld [vmem:[%s207 + $0xc8] sm:$0xff]
      %v305 = vld [vmem:[%s207 + $0xd0] sm:$0xff]
      %v306 = vld [vmem:[%s207 + $0xd8] sm:$0xff]
      %v307 = vld [vmem:[%s207 + $0xe0] sm:$0xff]
      %v308 = vld [vmem:[%s207 + $0xe8] sm:$0xff]
      %v309 = vld [vmem:[%s207 + $0xf0] sm:$0xff]
      %v310 = vld [vmem:[%s207 + $0xf8] sm:$0xff]
      %v311 = vld [vmem:[%s207 + $0x100] sm:$0xff]
      %v312 = vld [vmem:[%s207 + $0x108] sm:$0xff]
      %v313 = vld [vmem:[%s207 + $0x110] sm:$0xff]
      %v314 = vld [vmem:[%s207 + $0x118] sm:$0xff]
      %v315 = vld [vmem:[%s207 + $0x120] sm:$0xff]
      %v316 = vld [vmem:[%s207 + $0x128] sm:$0xff]
      %v317 = vld [vmem:[%s207 + $0x130] sm:$0xff]
      %v318 = vld [vmem:[%s207 + $0x138] sm:$0xff]
      %v319 = vld [vmem:[%s207 + $0x140] sm:$0xff]
      %v320 = vld [vmem:[%s207 + $0x148] sm:$0xff]
      %v321 = vld [vmem:[%s207 + $0x150] sm:$0xff]
      %v322 = vld [vmem:[%s207 + $0x158] sm:$0xff]
      %v323 = vld [vmem:[%s207 + $0x160] sm:$0xff]
      %v324 = vld [vmem:[%s207 + $0x168] sm:$0xff]
      %v325 = vld [vmem:[%s207 + $0x170] sm:$0xff]
      %v326 = vld [vmem:[%s207 + $0x178] sm:$0xff]
      %v327 = vld [vmem:[%s207 + $0x180] sm:$0xff]
      %v328 = vld [vmem:[%s207 + $0x188] sm:$0xff]
      %v329 = vld [vmem:[%s207 + $0x190] sm:$0xff]
      %v330 = vld [vmem:[%s207 + $0x198] sm:$0xff]
      %v331 = vld [vmem:[%s207 + $0x1a0] sm:$0xff]
      %v332 = vld [vmem:[%s207 + $0x1a8] sm:$0xff]
      %v333 = vld [vmem:[%s207 + $0x1b0] sm:$0xff]
      %v334 = vld [vmem:[%s207 + $0x1b8] sm:$0xff]
      %v335 = vld [vmem:[%s207 + $0x1c0] sm:$0xff]
      %v336 = vld [vmem:[%s207 + $0x1c8] sm:$0xff]
      %v337 = vld [vmem:[%s207 + $0x1d0] sm:$0xff]
      %v338 = vld [vmem:[%s207 + $0x1d8] sm:$0xff]
      %340 = vset.pattern.permute.xlu0 0
      %341 = vperm.xlu0 %340, %v279
      %v342 = vpop.permute.xlu0 %341
      %345 = vset.pattern.permute.xlu0 0
      %346 = vperm.xlu0 %345, %v280
      %v347 = vpop.permute.xlu0 %346
      %350 = vset.pattern.permute.xlu0 0
      %351 = vperm.xlu0 %350, %v281
      %v352 = vpop.permute.xlu0 %351
      %355 = vset.pattern.permute.xlu0 0
      %356 = vperm.xlu0 %355, %v282
      %v357 = vpop.permute.xlu0 %356
      %360 = vset.pattern.permute.xlu0 0
      %361 = vperm.xlu0 %360, %v283
      %v362 = vpop.permute.xlu0 %361
      %365 = vset.pattern.permute.xlu0 0
      %366 = vperm.xlu0 %365, %v284
      %v367 = vpop.permute.xlu0 %366
      %370 = vset.pattern.permute.xlu0 0
      %371 = vperm.xlu0 %370, %v285
      %v372 = vpop.permute.xlu0 %371
      %375 = vset.pattern.permute.xlu0 0
      %376 = vperm.xlu0 %375, %v286
      %v377 = vpop.permute.xlu0 %376
      %380 = vset.pattern.permute.xlu0 0
      %381 = vperm.xlu0 %380, %v287
      %v382 = vpop.permute.xlu0 %381
      %385 = vset.pattern.permute.xlu0 0
      %386 = vperm.xlu0 %385, %v288
      %v387 = vpop.permute.xlu0 %386
      %390 = vset.pattern.permute.xlu0 0
      %391 = vperm.xlu0 %390, %v289
      %v392 = vpop.permute.xlu0 %391
      %395 = vset.pattern.permute.xlu0 0
      %396 = vperm.xlu0 %395, %v290
      %v397 = vpop.permute.xlu0 %396
      %400 = vset.pattern.permute.xlu0 0
      %401 = vperm.xlu0 %400, %v291
      %v402 = vpop.permute.xlu0 %401
      %405 = vset.pattern.permute.xlu0 0
      %406 = vperm.xlu0 %405, %v292
      %v407 = vpop.permute.xlu0 %406
      %410 = vset.pattern.permute.xlu0 0
      %411 = vperm.xlu0 %410, %v293
      %v412 = vpop.permute.xlu0 %411
      %415 = vset.pattern.permute.xlu0 0
      %416 = vperm.xlu0 %415, %v294
      %v417 = vpop.permute.xlu0 %416
      %420 = vset.pattern.permute.xlu0 0
      %421 = vperm.xlu0 %420, %v295
      %v422 = vpop.permute.xlu0 %421
      %425 = vset.pattern.permute.xlu0 0
      %426 = vperm.xlu0 %425, %v296
      %v427 = vpop.permute.xlu0 %426
      %430 = vset.pattern.permute.xlu0 0
      %431 = vperm.xlu0 %430, %v297
      %v432 = vpop.permute.xlu0 %431
      %435 = vset.pattern.permute.xlu0 0
      %436 = vperm.xlu0 %435, %v298
      %v437 = vpop.permute.xlu0 %436
      %440 = vset.pattern.permute.xlu0 0
      %441 = vperm.xlu0 %440, %v299
      %v442 = vpop.permute.xlu0 %441
      %445 = vset.pattern.permute.xlu0 0
      %446 = vperm.xlu0 %445, %v300
      %v447 = vpop.permute.xlu0 %446
      %450 = vset.pattern.permute.xlu0 0
      %451 = vperm.xlu0 %450, %v301
      %v452 = vpop.permute.xlu0 %451
      %455 = vset.pattern.permute.xlu0 0
      %456 = vperm.xlu0 %455, %v302
      %v457 = vpop.permute.xlu0 %456
      %460 = vset.pattern.permute.xlu0 0
      %461 = vperm.xlu0 %460, %v303
      %v462 = vpop.permute.xlu0 %461
      %465 = vset.pattern.permute.xlu0 0
      %466 = vperm.xlu0 %465, %v304
      %v467 = vpop.permute.xlu0 %466
      %470 = vset.pattern.permute.xlu0 0
      %471 = vperm.xlu0 %470, %v305
      %v472 = vpop.permute.xlu0 %471
      %475 = vset.pattern.permute.xlu0 0
      %476 = vperm.xlu0 %475, %v306
      %v477 = vpop.permute.xlu0 %476
      %480 = vset.pattern.permute.xlu0 0
      %481 = vperm.xlu0 %480, %v307
      %v482 = vpop.permute.xlu0 %481
      %485 = vset.pattern.permute.xlu0 0
      %486 = vperm.xlu0 %485, %v308
      %v487 = vpop.permute.xlu0 %486
      %490 = vset.pattern.permute.xlu0 0
      %491 = vperm.xlu0 %490, %v309
      %v492 = vpop.permute.xlu0 %491
      %495 = vset.pattern.permute.xlu0 0
      %496 = vperm.xlu0 %495, %v310
      %v497 = vpop.permute.xlu0 %496
      %500 = vset.pattern.permute.xlu0 0
      %501 = vperm.xlu0 %500, %v311
      %v502 = vpop.permute.xlu0 %501
      %505 = vset.pattern.permute.xlu0 0
      %506 = vperm.xlu0 %505, %v312
      %v507 = vpop.permute.xlu0 %506
      %510 = vset.pattern.permute.xlu0 0
      %511 = vperm.xlu0 %510, %v313
      %v512 = vpop.permute.xlu0 %511
      %515 = vset.pattern.permute.xlu0 0
      %516 = vperm.xlu0 %515, %v314
      %v517 = vpop.permute.xlu0 %516
      %520 = vset.pattern.permute.xlu0 0
      %521 = vperm.xlu0 %520, %v315
      %v522 = vpop.permute.xlu0 %521
      %525 = vset.pattern.permute.xlu0 0
      %526 = vperm.xlu0 %525, %v316
      %v527 = vpop.permute.xlu0 %526
      %530 = vset.pattern.permute.xlu0 0
      %531 = vperm.xlu0 %530, %v317
      %v532 = vpop.permute.xlu0 %531
      %535 = vset.pattern.permute.xlu0 0
      %536 = vperm.xlu0 %535, %v318
      %v537 = vpop.permute.xlu0 %536
      %540 = vset.pattern.permute.xlu0 0
      %541 = vperm.xlu0 %540, %v319
      %v542 = vpop.permute.xlu0 %541
      %545 = vset.pattern.permute.xlu0 0
      %546 = vperm.xlu0 %545, %v320
      %v547 = vpop.permute.xlu0 %546
      %550 = vset.pattern.permute.xlu0 0
      %551 = vperm.xlu0 %550, %v321
      %v552 = vpop.permute.xlu0 %551
      %555 = vset.pattern.permute.xlu0 0
      %556 = vperm.xlu0 %555, %v322
      %v557 = vpop.permute.xlu0 %556
      %560 = vset.pattern.permute.xlu0 0
      %561 = vperm.xlu0 %560, %v323
      %v562 = vpop.permute.xlu0 %561
      %565 = vset.pattern.permute.xlu0 0
      %566 = vperm.xlu0 %565, %v324
      %v567 = vpop.permute.xlu0 %566
      %570 = vset.pattern.permute.xlu0 0
      %571 = vperm.xlu0 %570, %v325
      %v572 = vpop.permute.xlu0 %571
      %575 = vset.pattern.permute.xlu0 0
      %576 = vperm.xlu0 %575, %v326
      %v577 = vpop.permute.xlu0 %576
      %580 = vset.pattern.permute.xlu0 0
      %581 = vperm.xlu0 %580, %v327
      %v582 = vpop.permute.xlu0 %581
      %585 = vset.pattern.permute.xlu0 0
      %586 = vperm.xlu0 %585, %v328
      %v587 = vpop.permute.xlu0 %586
      %590 = vset.pattern.permute.xlu0 0
      %591 = vperm.xlu0 %590, %v329
      %v592 = vpop.permute.xlu0 %591
      %595 = vset.pattern.permute.xlu0 0
      %596 = vperm.xlu0 %595, %v330
      %v597 = vpop.permute.xlu0 %596
      %600 = vset.pattern.permute.xlu0 0
      %601 = vperm.xlu0 %600, %v331
      %v602 = vpop.permute.xlu0 %601
      %605 = vset.pattern.permute.xlu0 0
      %606 = vperm.xlu0 %605, %v332
      %v607 = vpop.permute.xlu0 %606
      %610 = vset.pattern.permute.xlu0 0
      %611 = vperm.xlu0 %610, %v333
      %v612 = vpop.permute.xlu0 %611
      %615 = vset.pattern.permute.xlu0 0
      %616 = vperm.xlu0 %615, %v334
      %v617 = vpop.permute.xlu0 %616
      %620 = vset.pattern.permute.xlu0 0
      %621 = vperm.xlu0 %620, %v335
      %v622 = vpop.permute.xlu0 %621
      %625 = vset.pattern.permute.xlu0 0
      %626 = vperm.xlu0 %625, %v336
      %v627 = vpop.permute.xlu0 %626
      %630 = vset.pattern.permute.xlu0 0
      %631 = vperm.xlu0 %630, %v337
      %v632 = vpop.permute.xlu0 %631
      %635 = vset.pattern.permute.xlu0 0
      %636 = vperm.xlu0 %635, %v338
      %v637 = vpop.permute.xlu0 %636
      %v639 = vmul.f32 %v219, %v342
      %v640 = vmul.f32 %v220, %v347
      %v641 = vmul.f32 %v221, %v352
      %v642 = vmul.f32 %v222, %v357
      %v643 = vmul.f32 %v223, %v362
      %v644 = vmul.f32 %v224, %v367
      %v645 = vmul.f32 %v225, %v372
      %v646 = vmul.f32 %v226, %v377
      %v647 = vmul.f32 %v227, %v382
      %v648 = vmul.f32 %v228, %v387
      %v649 = vmul.f32 %v229, %v392
      %v650 = vmul.f32 %v230, %v397
      %v651 = vmul.f32 %v231, %v402
      %v652 = vmul.f32 %v232, %v407
      %v653 = vmul.f32 %v233, %v412
      %v654 = vmul.f32 %v234, %v417
      %v655 = vmul.f32 %v235, %v422
      %v656 = vmul.f32 %v236, %v427
      %v657 = vmul.f32 %v237, %v432
      %v658 = vmul.f32 %v238, %v437
      %v659 = vmul.f32 %v239, %v442
      %v660 = vmul.f32 %v240, %v447
      %v661 = vmul.f32 %v241, %v452
      %v662 = vmul.f32 %v242, %v457
      %v663 = vmul.f32 %v243, %v462
      %v664 = vmul.f32 %v244, %v467
      %v665 = vmul.f32 %v245, %v472
      %v666 = vmul.f32 %v246, %v477
      %v667 = vmul.f32 %v247, %v482
      %v668 = vmul.f32 %v248, %v487
      %v669 = vmul.f32 %v249, %v492
      %v670 = vmul.f32 %v250, %v497
      %v671 = vmul.f32 %v251, %v502
      %v672 = vmul.f32 %v252, %v507
      %v673 = vmul.f32 %v253, %v512
      %v674 = vmul.f32 %v254, %v517
      %v675 = vmul.f32 %v255, %v522
      %v676 = vmul.f32 %v256, %v527
      %v677 = vmul.f32 %v257, %v532
      %v678 = vmul.f32 %v258, %v537
      %v679 = vmul.f32 %v259, %v542
      %v680 = vmul.f32 %v260, %v547
      %v681 = vmul.f32 %v261, %v552
      %v682 = vmul.f32 %v262, %v557
      %v683 = vmul.f32 %v263, %v562
      %v684 = vmul.f32 %v264, %v567
      %v685 = vmul.f32 %v265, %v572
      %v686 = vmul.f32 %v266, %v577
      %v687 = vmul.f32 %v267, %v582
      %v688 = vmul.f32 %v268, %v587
      %v689 = vmul.f32 %v269, %v592
      %v690 = vmul.f32 %v270, %v597
      %v691 = vmul.f32 %v271, %v602
      %v692 = vmul.f32 %v272, %v607
      %v693 = vmul.f32 %v273, %v612
      %v694 = vmul.f32 %v274, %v617
      %v695 = vmul.f32 %v275, %v622
      %v696 = vmul.f32 %v276, %v627
      %v697 = vmul.f32 %v277, %v632
      %v698 = vmul.f32 %v278, %v637
      %vm699 = vcmask 400384
      %700 = vst.msk [vmem:[%s217] sm:$0xff] %vm699, %v639
      %701 = vst.msk [vmem:[%s217 + $0x8] sm:$0xff] %vm699, %v640
      %702 = vst.msk [vmem:[%s217 + $0x10] sm:$0xff] %vm699, %v641
      %703 = vst.msk [vmem:[%s217 + $0x18] sm:$0xff] %vm699, %v642
      %704 = vst.msk [vmem:[%s217 + $0x20] sm:$0xff] %vm699, %v643
      %705 = vst.msk [vmem:[%s217 + $0x28] sm:$0xff] %vm699, %v644
      %706 = vst.msk [vmem:[%s217 + $0x30] sm:$0xff] %vm699, %v645
      %707 = vst.msk [vmem:[%s217 + $0x38] sm:$0xff] %vm699, %v646
      %708 = vst.msk [vmem:[%s217 + $0x40] sm:$0xff] %vm699, %v647
      %709 = vst.msk [vmem:[%s217 + $0x48] sm:$0xff] %vm699, %v648
      %710 = vst.msk [vmem:[%s217 + $0x50] sm:$0xff] %vm699, %v649
      %711 = vst.msk [vmem:[%s217 + $0x58] sm:$0xff] %vm699, %v650
      %712 = vst.msk [vmem:[%s217 + $0x60] sm:$0xff] %vm699, %v651
      %713 = vst.msk [vmem:[%s217 + $0x68] sm:$0xff] %vm699, %v652
      %714 = vst.msk [vmem:[%s217 + $0x70] sm:$0xff] %vm699, %v653
      %715 = vst.msk [vmem:[%s217 + $0x78] sm:$0xff] %vm699, %v654
      %716 = vst.msk [vmem:[%s217 + $0x80] sm:$0xff] %vm699, %v655
      %717 = vst.msk [vmem:[%s217 + $0x88] sm:$0xff] %vm699, %v656
      %718 = vst.msk [vmem:[%s217 + $0x90] sm:$0xff] %vm699, %v657
      %719 = vst.msk [vmem:[%s217 + $0x98] sm:$0xff] %vm699, %v658
      %720 = vst.msk [vmem:[%s217 + $0xa0] sm:$0xff] %vm699, %v659
      %721 = vst.msk [vmem:[%s217 + $0xa8] sm:$0xff] %vm699, %v660
      %722 = vst.msk [vmem:[%s217 + $0xb0] sm:$0xff] %vm699, %v661
      %723 = vst.msk [vmem:[%s217 + $0xb8] sm:$0xff] %vm699, %v662
      %724 = vst.msk [vmem:[%s217 + $0xc0] sm:$0xff] %vm699, %v663
      %725 = vst.msk [vmem:[%s217 + $0xc8] sm:$0xff] %vm699, %v664
      %726 = vst.msk [vmem:[%s217 + $0xd0] sm:$0xff] %vm699, %v665
      %727 = vst.msk [vmem:[%s217 + $0xd8] sm:$0xff] %vm699, %v666
      %728 = vst.msk [vmem:[%s217 + $0xe0] sm:$0xff] %vm699, %v667
      %729 = vst.msk [vmem:[%s217 + $0xe8] sm:$0xff] %vm699, %v668
      %730 = vst.msk [vmem:[%s217 + $0xf0] sm:$0xff] %vm699, %v669
      %731 = vst.msk [vmem:[%s217 + $0xf8] sm:$0xff] %vm699, %v670
      %732 = vst.msk [vmem:[%s217 + $0x100] sm:$0xff] %vm699, %v671
      %733 = vst.msk [vmem:[%s217 + $0x108] sm:$0xff] %vm699, %v672
      %734 = vst.msk [vmem:[%s217 + $0x110] sm:$0xff] %vm699, %v673
      %735 = vst.msk [vmem:[%s217 + $0x118] sm:$0xff] %vm699, %v674
      %736 = vst.msk [vmem:[%s217 + $0x120] sm:$0xff] %vm699, %v675
      %737 = vst.msk [vmem:[%s217 + $0x128] sm:$0xff] %vm699, %v676
      %738 = vst.msk [vmem:[%s217 + $0x130] sm:$0xff] %vm699, %v677
      %739 = vst.msk [vmem:[%s217 + $0x138] sm:$0xff] %vm699, %v678
      %740 = vst.msk [vmem:[%s217 + $0x140] sm:$0xff] %vm699, %v679
      %741 = vst.msk [vmem:[%s217 + $0x148] sm:$0xff] %vm699, %v680
      %742 = vst.msk [vmem:[%s217 + $0x150] sm:$0xff] %vm699, %v681
      %743 = vst.msk [vmem:[%s217 + $0x158] sm:$0xff] %vm699, %v682
      %744 = vst.msk [vmem:[%s217 + $0x160] sm:$0xff] %vm699, %v683
      %745 = vst.msk [vmem:[%s217 + $0x168] sm:$0xff] %vm699, %v684
      %746 = vst.msk [vmem:[%s217 + $0x170] sm:$0xff] %vm699, %v685
      %747 = vst.msk [vmem:[%s217 + $0x178] sm:$0xff] %vm699, %v686
      %748 = vst.msk [vmem:[%s217 + $0x180] sm:$0xff] %vm699, %v687
      %749 = vst.msk [vmem:[%s217 + $0x188] sm:$0xff] %vm699, %v688
      %750 = vst.msk [vmem:[%s217 + $0x190] sm:$0xff] %vm699, %v689
      %751 = vst.msk [vmem:[%s217 + $0x198] sm:$0xff] %vm699, %v690
      %752 = vst.msk [vmem:[%s217 + $0x1a0] sm:$0xff] %vm699, %v691
      %753 = vst.msk [vmem:[%s217 + $0x1a8] sm:$0xff] %vm699, %v692
      %754 = vst.msk [vmem:[%s217 + $0x1b0] sm:$0xff] %vm699, %v693
      %755 = vst.msk [vmem:[%s217 + $0x1b8] sm:$0xff] %vm699, %v694
      %756 = vst.msk [vmem:[%s217 + $0x1c0] sm:$0xff] %vm699, %v695
      %757 = vst.msk [vmem:[%s217 + $0x1c8] sm:$0xff] %vm699, %v696
      %758 = vst.msk [vmem:[%s217 + $0x1d0] sm:$0xff] %vm699, %v697
      %759 = vst.msk [vmem:[%s217 + $0x1d8] sm:$0xff] %vm699, %v698
      %s760 = smul.u32 60, %s18
      %p761 = scmp.lt.s32.totalorder %s17, 0
      %s762 = scalar_select %p761, %s17, 0
      %p763 = scmp.lt.s32.totalorder %s760, 479
      %s764 = scalar_select %p763, %s760, 479
      %s765 = smul.addr %s762, 480
      %s766 = sadd.s32 %s764, %s765
      %s767 = smul.addr %s766, 8
      %s768 = scalar_lea.vmem %s2, %s767
      // Predicated region
      $region29: #{tpu_custom_call.1} parent=27 // pred_check
        %p769 = pneg %p101
      $region30: #{tpu_custom_call.1} parent=27 // pred_check_branch
        %771 = sbr.rel (%p769) target = $region32
      $region31: #{tpu_custom_call.1} parent=27 // pred_region
        %s772 = smul.u32 60, %s18
      $region32: #{tpu_custom_call.1} parent=27 // pred_fallthru
        _
    $region28: #{tpu_custom_call.1} parent=5 // pred_fallthru
      _
    %p773 = scmp.le.s32.totalorder 2, %s8
    // Predicated region
    $region33: #{tpu_custom_call.1} parent=5 // pred_check
      %p774 = pneg %p773
    $region34: #{tpu_custom_call.1} parent=5 // pred_check_branch
      %776 = sbr.rel (%p774) target = $region36
    $region35: #{tpu_custom_call.1} parent=5 // pred_region
      %s777 = ssub.s32 %s8, 2
      // Predicated region
      $region37: #{tpu_custom_call.1} parent=35 // pred_check
        %p778 = pneg %p107
      $region38: #{tpu_custom_call.1} parent=35 // pred_check_branch
        %780 = sbr.rel (%p778) target = $region40
      $region39: #{tpu_custom_call.1} parent=35 // pred_region
        %s781 = smul.u32 60, %s20
        %p782 = scmp.lt.s32.totalorder %s19, 0
        %s783 = scalar_select %p782, %s19, 0
        %p784 = scmp.lt.s32.totalorder %s781, 479
        %s785 = scalar_select %p784, %s781, 479
        %s786 = smul.addr %s783, 480
        %s787 = sadd.s32 %s785, %s786
        %s788 = smul.addr %s787, 8
        %s789 = scalar_lea.vmem %s2, %s788
      $region40: #{tpu_custom_call.1} parent=35 // pred_fallthru
        _
    $region36: #{tpu_custom_call.1} parent=5 // pred_fallthru
      _
  $region6: #{tpu_custom_call.1} parent=0 // loop_footer
    %s12 = sadd.s32 1, %s8
  $region7: #{tpu_custom_call.1} parent=0 // loop_footer_branch
    %7 = sbr.rel target = $region3
  $region8: #{tpu_custom_call.1} parent=0 // loop_exit
    _

</llo_original>
